<compile_context>
chip_gen: v5e
topology: v5e:2x2
jax: 0.10.0
libtpu: 0.0.40
codegen_flags: <defaults>
</compile_context>

<pallas_src>
import functools

import jax
import jax.numpy as jnp
from jax.experimental import pallas as pl
from jax.experimental.pallas import tpu as pltpu


# ------------------------------- kernels ------------------------------------

def pool_mlp_kernel(feat_ref, w1_ref, b1_ref, w2_ref, b2_ref, h2_ref, acc_ref,
                    *, inv_hw):
    """Global-avg-pool (tiled over HW) + fc1/ReLU + fc2/ReLU -> h2 (N, 128)."""
    k = pl.program_id(0)

    @pl.when(k == 0)
    def _():
        acc_ref[...] = jnp.zeros_like(acc_ref)

    # feat_ref: (N, THW, C) bf16 -> f32 partial sums over this HW tile.
    acc_ref[...] += jnp.sum(feat_ref[...].astype(jnp.float32), axis=1)

    @pl.when(k == pl.num_programs(0) - 1)
    def _():
        pooled = acc_ref[...] * inv_hw                                  # (N, 512) f32
        h1 = jnp.dot(pooled, w1_ref[...],
                     preferred_element_type=jnp.float32) + b1_ref[...]  # (N, 256)
        h1 = jnp.maximum(h1, 0.0)
        h2 = jnp.dot(h1, w2_ref[...],
                     preferred_element_type=jnp.float32) + b2_ref[...]  # (N, 128)
        h2 = jnp.maximum(h2, 0.0)
        h2_ref[...] = h2.astype(h2_ref.dtype)


def head_kernel(h2_ref, w3_ref, b3_ref, out_ref):
    """One (N, TN) column tile of Linear(128, 2*sz*sz): f32 accumulate + bias."""
    out_ref[...] = (jnp.dot(h2_ref[...], w3_ref[...],
                            preferred_element_type=jnp.float32)
                    + b3_ref[...]).astype(out_ref.dtype)


# ---------------------------- tile selection ---------------------------------

def _pick_row_tile(hw, max_bytes_per_buf, row_bytes):
    """Largest multiple-of-8 divisor of hw whose feat tile fits the byte budget."""
    max_rows = max(8, (max_bytes_per_buf // max(row_bytes, 1)) // 8 * 8)
    if hw <= max_rows:
        return hw
    for t in range(max_rows, 7, -8):
        if hw % t == 0:
            return t
    return hw  # fallback: single full block (always layout-legal)


def _pick_col_tile(out_dim, max_tn=4096):
    """Largest multiple-of-128 divisor of out_dim that is <= max_tn."""
    if out_dim <= max_tn:
        return out_dim
    for t in range(max_tn // 128 * 128, 127, -128):
        if out_dim % t == 0:
            return t
    return out_dim


# ------------------------------- wrapper -------------------------------------

def sampler_head_forward(feat_nchw, params, sz):
    """Full SamplerHead.forward: NCHW feat -> (N, sz, sz, 2) sampling grid."""
    n, c, h, w = feat_nchw.shape
    assert c == 512, "SamplerHead expects 512 input channels"
    hw = h * w
    out_dim = 2 * sz * sz
    w1, b1, w2, b2, w3, b3 = params

    # (N, HW, C): C=512 on lanes; stream feat and the big w3 in bf16.
    feat = jnp.transpose(feat_nchw.reshape(n, c, hw), (0, 2, 1)).astype(jnp.bfloat16)
    w3_bf = w3.astype(jnp.bfloat16)

    # ---- kernel 1: pool + fc1 + fc2 -> h2 (N, 128) bf16 ----------------------
    thw = _pick_row_tile(hw, max_bytes_per_buf=1 << 20, row_bytes=n * c * 2)
    h2 = pl.pallas_call(
        functools.partial(pool_mlp_kernel, inv_hw=1.0 / hw),
        out_shape=jax.ShapeDtypeStruct((n, 128), jnp.bfloat16),
        grid=(hw // thw,),
        in_specs=[pl.BlockSpec((n, thw, c), lambda k: (0, k, 0)),
                  pl.BlockSpec((512, 256), lambda k: (0, 0)),
                  pl.BlockSpec((1, 256), lambda k: (0, 0)),
                  pl.BlockSpec((256, 128), lambda k: (0, 0)),
                  pl.BlockSpec((1, 128), lambda k: (0, 0))],
        out_specs=pl.BlockSpec((n, 128), lambda k: (0, 0)),
        scratch_shapes=[pltpu.VMEM((n, 512), jnp.float32)],
        compiler_params=pltpu.CompilerParams(
            dimension_semantics=("arbitrary",)),
        cost_estimate=pl.CostEstimate(
            flops=n * hw * 512 + 2 * n * (512 * 256 + 256 * 128),
            transcendentals=0,
            bytes_accessed=n * hw * 512 * 2
            + (512 * 256 + 256 + 256 * 128 + 128) * 4 + n * 128 * 2),
    )(feat, w1, b1, w2, b2)

    # ---- kernel 2: fc3 tiled over output columns (parallel across TCs) ------
    tn = _pick_col_tile(out_dim, max_tn=4096)
    xym = pl.pallas_call(
        head_kernel,
        out_shape=jax.ShapeDtypeStruct((n, out_dim), jnp.float32),
        grid=(out_dim // tn,),
        in_specs=[pl.BlockSpec((n, 128), lambda j: (0, 0)),
                  pl.BlockSpec((128, tn), lambda j: (0, j)),
                  pl.BlockSpec((1, tn), lambda j: (0, j))],
        out_specs=pl.BlockSpec((n, tn), lambda j: (0, j)),
        compiler_params=pltpu.CompilerParams(
            dimension_semantics=("parallel",)),
        cost_estimate=pl.CostEstimate(
            flops=2 * n * 128 * out_dim,
            transcendentals=0,
            bytes_accessed=n * 128 * 2 + 128 * out_dim * 2
            + out_dim * 4 + n * out_dim * 4),
    )(h2, w3_bf, b3)

    # glue: split xx/yy and stack into the (N, sz, sz, 2) grid (module layout)
    xx = xym[:, :sz * sz].reshape(n, sz, sz)
    yy = xym[:, sz * sz:].reshape(n, sz, sz)
    return jnp.stack((xx, yy), axis=3)


# ----------------------------------------------------------------------------
# Deterministic parameter init matching SamplerHead.__init__ / initialize()
# ----------------------------------------------------------------------------
def _xavier_uniform(key, fan_in, fan_out):
    bound = (6.0 / (fan_in + fan_out)) ** 0.5
    return jax.random.uniform(key, (fan_in, fan_out), jnp.float32, -bound, bound)


def init_sampler_head_params(key, sz):
    k1, k2 = jax.random.split(key)
    w1 = _xavier_uniform(k1, 512, 256)
    b1 = jnp.zeros((1, 256), jnp.float32)
    w2 = _xavier_uniform(k2, 256, 128)
    b2 = jnp.zeros((1, 128), jnp.float32)
    # last layer: weight zeroed, bias = flattened identity affine_grid coords
    w3 = jnp.zeros((128, 2 * sz * sz), jnp.float32)
    coords = jnp.linspace(-1.0, 1.0, sz)          # align_corners=True
    X = jnp.tile(coords, sz)                      # grid[0, ..., 0].view(-1): x fastest
    Y = jnp.repeat(coords, sz)                    # grid[0, ..., 1].view(-1)
    b3 = jnp.concatenate([X, Y]).reshape(1, 2 * sz * sz).astype(jnp.float32)
    return (w1, b1, w2, b2, w3, b3)


def _reference_forward(feat_nchw, params, sz):
    """Pure-JAX reference mirroring the kernel's numeric path (bf16 feat/w3/h2)."""
    w1, b1, w2, b2, w3, b3 = params
    n, c, h, w = feat_nchw.shape
    feat = jnp.transpose(feat_nchw.reshape(n, c, h * w), (0, 2, 1)).astype(jnp.bfloat16)
    pooled = jnp.mean(feat.astype(jnp.float32), axis=1)
    h1 = jnp.maximum(pooled @ w1 + b1, 0.0)
    h2 = jnp.maximum(h1 @ w2 + b2, 0.0).astype(jnp.bfloat16)
    xym = jnp.dot(h2, w3.astype(jnp.bfloat16),
                  preferred_element_type=jnp.float32) + b3
    xx = xym[:, :sz * sz].reshape(n, sz, sz)
    yy = xym[:, sz * sz:].reshape(n, sz, sz)
    return jnp.stack((xx, yy), axis=3)


if __name__ == "__main__":
    key = jax.random.PRNGKey(0)
    k_feat, k_params, k_chk, k_feat2, k_chk2 = jax.random.split(key, 5)

    # --- small test: sz=8 (out_dim=128), 8x8 feature map, single-tile grids ---
    SZ, N, C, H, W = 8, 2, 512, 8, 8
    feat = jax.random.normal(k_feat, (N, C, H, W), jnp.float32)
    params = init_sampler_head_params(k_params, SZ)

    # numerics check with a non-zero last layer (module init zeroes w3)
    chk = list(params)
    chk[4] = 0.01 * jax.random.normal(k_chk, params[4].shape, jnp.float32)
    chk = tuple(chk)
    out = sampler_head_forward(feat, chk, SZ)
    ref = _reference_forward(feat, chk, SZ)
    assert out.shape == (N, SZ, SZ, 2)
    assert jnp.allclose(out, ref, atol=1e-3, rtol=1e-3), float(jnp.max(jnp.abs(out - ref)))

    # actual module-style init (w3 zeroed -> output is the identity affine grid)
    grid = jax.block_until_ready(sampler_head_forward(feat, params, SZ))
    ref_grid = _reference_forward(feat, params, SZ)
    assert jnp.allclose(grid, ref_grid, atol=1e-4)

    # --- multi-tile test: HW=576 -> 2 pooling steps; out_dim=4608 -> 2 column tiles
    SZ2, H2, W2 = 48, 24, 24
    feat2 = jax.random.normal(k_feat2, (N, C, H2, W2), jnp.float32)
    params2 = list(init_sampler_head_params(k_params, SZ2))
    params2[4] = 0.01 * jax.random.normal(k_chk2, params2[4].shape, jnp.float32)
    params2 = tuple(params2)
    out2 = jax.block_until_ready(sampler_head_forward(feat2, params2, SZ2))
    ref2 = _reference_forward(feat2, params2, SZ2)
    assert out2.shape == (N, SZ2, SZ2, 2)
    assert jnp.allclose(out2, ref2, atol=1e-3, rtol=1e-3), float(jnp.max(jnp.abs(out2 - ref2)))

    print("KERNEL_OK")
</pallas_src>

<mosaic_0001>
module attributes {stable_mosaic.version = 11 : i64} {
  func.func @pool_mlp_kernel(%arg0: i32, %arg1: memref<2x64x512xbf16, #tpu.memory_space<vmem>>, %arg2: memref<512x256xf32, #tpu.memory_space<vmem>>, %arg3: memref<1x256xf32, #tpu.memory_space<vmem>>, %arg4: memref<256x128xf32, #tpu.memory_space<vmem>>, %arg5: memref<1x128xf32, #tpu.memory_space<vmem>>, %arg6: memref<2x128xbf16, #tpu.memory_space<vmem>>, %arg7: memref<2x512xf32, #tpu.memory_space<vmem>>) attributes {dimension_semantics = [#tpu.dimension_semantics<arbitrary>], iteration_bounds = array<i64: 1>, scalar_prefetch = 0 : i64, scratch_operands = 1 : i64, tpu.core_type = #tpu.core_type<tc>, window_params = [{transform_indices = @transform_0, window_bounds = array<i64: 2, 64, 512>}, {pipeline_mode = #tpu.pipeline_mode<synchronous>, transform_indices = @transform_1, window_bounds = array<i64: 512, 256>}, {pipeline_mode = #tpu.pipeline_mode<synchronous>, transform_indices = @transform_2, window_bounds = array<i64: 1, 256>}, {pipeline_mode = #tpu.pipeline_mode<synchronous>, transform_indices = @transform_3, window_bounds = array<i64: 256, 128>}, {pipeline_mode = #tpu.pipeline_mode<synchronous>, transform_indices = @transform_4, window_bounds = array<i64: 1, 128>}, {pipeline_mode = #tpu.pipeline_mode<synchronous>, transform_indices = @transform_5, window_bounds = array<i64: 2, 128>}]} {
    %c0_i32 = arith.constant 0 : i32
    %0 = arith.cmpi eq, %arg0, %c0_i32 : i32
    %1 = arith.extui %0 : i1 to i32
    %c0_i32_0 = arith.constant 0 : i32
    %2 = arith.cmpi ne, %1, %c0_i32_0 : i32
    scf.if %2 {
      %cst_9 = arith.constant 0.000000e+00 : f32
      %12 = vector.broadcast %cst_9 : f32 to vector<2x512xf32>
      %c0_10 = arith.constant 0 : index
      %c0_11 = arith.constant 0 : index
      %13 = vector.load %arg7[%c0_10, %c0_11] : memref<2x512xf32, #tpu.memory_space<vmem>>, vector<2x512xf32>
      tpu.vector_store %arg7[%c0_10, %c0_11], %12 {strides = array<i32>} : memref<2x512xf32, #tpu.memory_space<vmem>>, vector<2x512xf32>,
    } else {
    }
    %c0 = arith.constant 0 : index
    %c0_1 = arith.constant 0 : index
    %3 = vector.load %arg7[%c0, %c0_1] : memref<2x512xf32, #tpu.memory_space<vmem>>, vector<2x512xf32>
    %c0_2 = arith.constant 0 : index
    %c0_3 = arith.constant 0 : index
    %c0_4 = arith.constant 0 : index
    %4 = vector.load %arg1[%c0_2, %c0_3, %c0_4] : memref<2x64x512xbf16, #tpu.memory_space<vmem>>, vector<2x64x512xbf16>
    %5 = arith.extf %4 : vector<2x64x512xbf16> to vector<2x64x512xf32>
    %cst = arith.constant dense<0.000000e+00> : vector<2x512xf32>
    %6 = vector.multi_reduction <add>, %5, %cst [1] : vector<2x64x512xf32> to vector<2x512xf32>
    %7 = arith.addf %3, %6 : vector<2x512xf32>
    %c0_5 = arith.constant 0 : index
    %c0_6 = arith.constant 0 : index
    %8 = vector.load %arg7[%c0_5, %c0_6] : memref<2x512xf32, #tpu.memory_space<vmem>>, vector<2x512xf32>
    tpu.vector_store %arg7[%c0_5, %c0_6], %7 {strides = array<i32>} : memref<2x512xf32, #tpu.memory_space<vmem>>, vector<2x512xf32>,
    %c0_i32_7 = arith.constant 0 : i32
    %9 = arith.cmpi eq, %arg0, %c0_i32_7 : i32
    %10 = arith.extui %9 : i1 to i32
    %c0_i32_8 = arith.constant 0 : i32
    %11 = arith.cmpi ne, %10, %c0_i32_8 : i32
    scf.if %11 {
      %c0_9 = arith.constant 0 : index
      %c0_10 = arith.constant 0 : index
      %12 = vector.load %arg7[%c0_9, %c0_10] : memref<2x512xf32, #tpu.memory_space<vmem>>, vector<2x512xf32>
      %cst_11 = arith.constant 1.562500e-02 : f32
      %13 = vector.broadcast %cst_11 : f32 to vector<2x512xf32>
      %14 = arith.mulf %12, %13 : vector<2x512xf32>
      %c0_12 = arith.constant 0 : index
      %c0_13 = arith.constant 0 : index
      %15 = vector.load %arg2[%c0_12, %c0_13] : memref<512x256xf32, #tpu.memory_space<vmem>>, vector<512x256xf32>
      %cst_14 = arith.constant dense<0.000000e+00> : vector<2x256xf32>
      %16 = tpu.matmul %14, %15, %cst_14 {dimension_numbers = #tpu.dot_dimension_numbers<[1], [0], [0], [1], [0, 0, 1, 1], [], []>} : vector<2x512xf32>, vector<512x256xf32>, vector<2x256xf32> -> vector<2x256xf32>
      %c0_15 = arith.constant 0 : index
      %c0_16 = arith.constant 0 : index
      %17 = vector.load %arg3[%c0_15, %c0_16] : memref<1x256xf32, #tpu.memory_space<vmem>>, vector<1x256xf32>
      %18 = vector.broadcast %17 : vector<1x256xf32> to vector<2x256xf32>
      %19 = arith.addf %16, %18 : vector<2x256xf32>
      %cst_17 = arith.constant 0.000000e+00 : f32
      %20 = vector.broadcast %cst_17 : f32 to vector<2x256xf32>
      %21 = arith.maximumf %19, %20 : vector<2x256xf32>
      %c0_18 = arith.constant 0 : index
      %c0_19 = arith.constant 0 : index
      %22 = vector.load %arg4[%c0_18, %c0_19] : memref<256x128xf32, #tpu.memory_space<vmem>>, vector<256x128xf32>
      %cst_20 = arith.constant dense<0.000000e+00> : vector<2x128xf32>
      %23 = tpu.matmul %21, %22, %cst_20 {dimension_numbers = #tpu.dot_dimension_numbers<[1], [0], [0], [1], [0, 0, 1, 1], [], []>} : vector<2x256xf32>, vector<256x128xf32>, vector<2x128xf32> -> vector<2x128xf32>
      %c0_21 = arith.constant 0 : index
      %c0_22 = arith.constant 0 : index
      %24 = vector.load %arg5[%c0_21, %c0_22] : memref<1x128xf32, #tpu.memory_space<vmem>>, vector<1x128xf32>
      %25 = vector.broadcast %24 : vector<1x128xf32> to vector<2x128xf32>
      %26 = arith.addf %23, %25 : vector<2x128xf32>
      %cst_23 = arith.constant 0.000000e+00 : f32
      %27 = vector.broadcast %cst_23 : f32 to vector<2x128xf32>
      %28 = arith.maximumf %26, %27 : vector<2x128xf32>
      %29 = arith.truncf %28 : vector<2x128xf32> to vector<2x128xbf16>
      %c0_24 = arith.constant 0 : index
      %c0_25 = arith.constant 0 : index
      %30 = vector.load %arg6[%c0_24, %c0_25] : memref<2x128xbf16, #tpu.memory_space<vmem>>, vector<2x128xbf16>
      tpu.vector_store %arg6[%c0_24, %c0_25], %29 {strides = array<i32>} : memref<2x128xbf16, #tpu.memory_space<vmem>>, vector<2x128xbf16>,
    } else {
    }
    return
  }
  func.func @transform_0(%arg0: i32) -> (i32, i32, i32) {
    %c0_i32 = arith.constant 0 : i32
    %c0_i32_0 = arith.constant 0 : i32
    %c0_i32_1 = arith.constant 0 : i32
    return %c0_i32, %arg0, %c0_i32_0 : i32, i32, i32
  }
  func.func @transform_1(%arg0: i32) -> (i32, i32) {
    %c0_i32 = arith.constant 0 : i32
    %c0_i32_0 = arith.constant 0 : i32
    %c0_i32_1 = arith.constant 0 : i32
    return %c0_i32, %c0_i32_0 : i32, i32
  }
  func.func @transform_2(%arg0: i32) -> (i32, i32) {
    %c0_i32 = arith.constant 0 : i32
    %c0_i32_0 = arith.constant 0 : i32
    %c0_i32_1 = arith.constant 0 : i32
    return %c0_i32, %c0_i32_0 : i32, i32
  }
  func.func @transform_3(%arg0: i32) -> (i32, i32) {
    %c0_i32 = arith.constant 0 : i32
    %c0_i32_0 = arith.constant 0 : i32
    %c0_i32_1 = arith.constant 0 : i32
    return %c0_i32, %c0_i32_0 : i32, i32
  }
  func.func @transform_4(%arg0: i32) -> (i32, i32) {
    %c0_i32 = arith.constant 0 : i32
    %c0_i32_0 = arith.constant 0 : i32
    %c0_i32_1 = arith.constant 0 : i32
    return %c0_i32, %c0_i32_0 : i32, i32
  }
  func.func @transform_5(%arg0: i32) -> (i32, i32) {
    %c0_i32 = arith.constant 0 : i32
    %c0_i32_0 = arith.constant 0 : i32
    %c0_i32_1 = arith.constant 0 : i32
    return %c0_i32, %c0_i32_0 : i32, i32
  }
}

</mosaic_0001>

<llo_original>
// kernel: tpu_custom_call.1
$region0: #{tpu_custom_call.1}
  #allocation0 [shape = 'u32[]', space=smem, size = 0x4, offset = 0x4, fixed_abs, tag = 'smem constant byte address 0x4 - core index']
  #allocation1 [shape = 'u32[72,128]{1,0:T(1,128)}', space=vmem, size = 0x9000, scoped, tag = 'internal scratch']
  #allocation2 [shape = 'f32[2,512]{1,0:T(2,128)}', space=vmem, size = 0x1000, scoped, tag = 'scratch operand']
  %s0 = inlined_call_operand.hbm [shape: bf16[2,64,512], index: 0, kind: input, shape index: {}]
  %s1 = inlined_call_operand.hbm [shape: f32[512,256], index: 1, kind: input, shape index: {}]
  %s2 = inlined_call_operand.hbm [shape: f32[1,256], index: 2, kind: input, shape index: {}]
  %s3 = inlined_call_operand.hbm [shape: f32[256,128], index: 3, kind: input, shape index: {}]
  %s4 = inlined_call_operand.vmem [shape: f32[1,128], index: 4, kind: input, shape index: {}]
  %s5 = inlined_call_operand.hbm [shape: bf16[2,128], index: 5, kind: output, shape index: {}]
  %s6 = sld [smem:[#allocation0]]
  $region54: #{tpu_custom_call.1} parent=0
    _
  %s8 = ssub.s32 1, %s6
  %s9 = scalar_select 0, %s8, %s6
  $region1: #{tpu_custom_call.1} parent=0
    #allocation3 [shape = 'u8[131072]{0}', space=vmem, size = 0x20000, scoped, tag = 'input window, operand 0, single buffered']
    #allocation4 [shape = 's32[1]{0}', space=sflag, size = 0x4, scoped, tag = 'scoped memory for tpu_custom_call.1']
    #allocation5 [shape = 's32[1]{0}', space=sflag, size = 0x4, scoped, tag = 'scoped memory for tpu_custom_call.1']
    #allocation6 [shape = 'u8[524288]{0}', space=vmem, size = 0x80000, scoped, tag = 'input window, operand 1, single buffered']
    #allocation7 [shape = 's32[1]{0}', space=sflag, size = 0x4, scoped, tag = 'scoped memory for tpu_custom_call.1']
    #allocation8 [shape = 'u8[1024]{0}', space=vmem, size = 0x400, scoped, tag = 'input window, operand 2, single buffered']
    #allocation9 [shape = 'u8[131072]{0}', space=vmem, size = 0x20000, scoped, tag = 'input window, operand 3, single buffered']
    #allocation10 [shape = 's32[1]{0}', space=sflag, size = 0x4, scoped, tag = 'scoped memory for tpu_custom_call.1']
    #allocation11 [shape = 'u8[512]{0}', space=vmem, size = 0x400, scoped, tag = 'output window, operand 0, single buffered']
    %10 = vsyncpa [#allocation4], 0
    %11 = vsyncpa [#allocation7], 0
    %12 = vsyncpa [#allocation10], 0
    %13 = vsyncpa [#allocation5], 0
    // Predicated region
    $region2: #{tpu_custom_call.1} parent=1 // pred_check
      _
    $region3: #{tpu_custom_call.1} parent=1 // pred_check_branch
      %15 = sbr.rel (0) target = $region5
    $region4: #{tpu_custom_call.1} parent=1 // pred_region
      %17 = vsyncadd [#allocation4], 0
      %s18 = sshll.u32 %s0, 4
      %s19 = int_to_ptr.hbm [resolvable:$true] %s18
      %s20 = sshll.u32 [#allocation3], 4
      %s21 = int_to_ptr.vmem [resolvable:$true] %s20
      %26 = dma.hbm_to_vmem [thread:$0]  %s19, 4096, %s21, [#allocation4], 256, 256, 16
    $region5: #{tpu_custom_call.1} parent=1 // pred_fallthru
      _
    // Predicated region
    $region6: #{tpu_custom_call.1} parent=1 // pred_check
      _
    $region7: #{tpu_custom_call.1} parent=1 // pred_check_branch
      %28 = sbr.rel (0) target = $region9
    $region8: #{tpu_custom_call.1} parent=1 // pred_region
      %30 = vsyncadd [#allocation7], 0
      %s31 = sshll.u32 %s1, 4
      %s32 = int_to_ptr.hbm [resolvable:$true] %s31
      %s33 = sshll.u32 [#allocation6], 4
      %s34 = int_to_ptr.vmem [resolvable:$true] %s33
      %39 = dma.hbm_to_vmem [thread:$0]  %s32, 16384, %s34, [#allocation7], 256, 256, 16
    $region9: #{tpu_custom_call.1} parent=1 // pred_fallthru
      _
    // Predicated region
    $region10: #{tpu_custom_call.1} parent=1 // pred_check
      _
    $region11: #{tpu_custom_call.1} parent=1 // pred_check_branch
      %41 = sbr.rel (0) target = $region13
    $region12: #{tpu_custom_call.1} parent=1 // pred_region
      %43 = vsyncadd [#allocation7], 0
      %s45 = sshll.u32 %s2, 4
      %s46 = int_to_ptr.hbm [resolvable:$true] %s45
      %s47 = sshll.u32 [#allocation8], 4
      %s48 = int_to_ptr.vmem [resolvable:$true] %s47
      %50 = dma.hbm_to_vmem [thread:$0]  %s46, 32, %s48, [#allocation7]
    $region13: #{tpu_custom_call.1} parent=1 // pred_fallthru
      _
    // Predicated region
    $region14: #{tpu_custom_call.1} parent=1 // pred_check
      _
    $region15: #{tpu_custom_call.1} parent=1 // pred_check_branch
      %52 = sbr.rel (0) target = $region17
    $region16: #{tpu_custom_call.1} parent=1 // pred_region
      %54 = vsyncadd [#allocation10], 0
      %s55 = sshll.u32 %s3, 4
      %s56 = int_to_ptr.hbm [resolvable:$true] %s55
      %s57 = sshll.u32 [#allocation9], 4
      %s58 = int_to_ptr.vmem [resolvable:$true] %s57
      %63 = dma.hbm_to_vmem [thread:$0]  %s56, 4096, %s58, [#allocation10], 128, 128, 8
    $region17: #{tpu_custom_call.1} parent=1 // pred_fallthru
      _
    // Predicated region
    $region18: #{tpu_custom_call.1} parent=1 // pred_check
      _
    $region19: #{tpu_custom_call.1} parent=1 // pred_check_branch
      %65 = sbr.rel (0) target = $region21
    $region20: #{tpu_custom_call.1} parent=1 // pred_region
      _
    $region21: #{tpu_custom_call.1} parent=1 // pred_fallthru
      _
    // Predicated region
    $region22: #{tpu_custom_call.1} parent=1 // pred_check
      _
    $region23: #{tpu_custom_call.1} parent=1 // pred_check_branch
      %67 = sbr.rel (0) target = $region25
    $region24: #{tpu_custom_call.1} parent=1 // pred_region
      %69 = dma.done [#allocation4], 4096
    $region25: #{tpu_custom_call.1} parent=1 // pred_fallthru
      _
    // Predicated region
    $region26: #{tpu_custom_call.1} parent=1 // pred_check
      _
    $region27: #{tpu_custom_call.1} parent=1 // pred_check_branch
      %71 = sbr.rel (0) target = $region29
    $region28: #{tpu_custom_call.1} parent=1 // pred_region
      %73 = dma.done [#allocation7], 16384
    $region29: #{tpu_custom_call.1} parent=1 // pred_fallthru
      _
    // Predicated region
    $region30: #{tpu_custom_call.1} parent=1 // pred_check
      _
    $region31: #{tpu_custom_call.1} parent=1 // pred_check_branch
      %75 = sbr.rel (0) target = $region33
    $region32: #{tpu_custom_call.1} parent=1 // pred_region
      %77 = dma.done [#allocation7], 32
    $region33: #{tpu_custom_call.1} parent=1 // pred_fallthru
      _
    // Predicated region
    $region34: #{tpu_custom_call.1} parent=1 // pred_check
      _
    $region35: #{tpu_custom_call.1} parent=1 // pred_check_branch
      %79 = sbr.rel (0) target = $region37
    $region36: #{tpu_custom_call.1} parent=1 // pred_region
      %81 = dma.done [#allocation10], 4096
    $region37: #{tpu_custom_call.1} parent=1 // pred_fallthru
      _
    %p82 = scmp.eq.s32.totalorder 0, 0
    // Predicated region
    $region38: #{tpu_custom_call.1} parent=1 // pred_check
      %p83 = pneg %p82
    $region39: #{tpu_custom_call.1} parent=1 // pred_check_branch
      %85 = sbr.rel (%p83) target = $region41
    $region40: #{tpu_custom_call.1} parent=1 // pred_region
      %86 = vst [vmem:[#allocation2] sm:$0xff] 0.0
    $region41: #{tpu_custom_call.1} parent=1 // pred_fallthru
      _
    %v87 = vld [vmem:[#allocation2] sm:$0xff]
    %v88 = vld [vmem:[#allocation3] sm:$0xff]
    %v89 = vld [vmem:[#allocation3 + $0x8] sm:$0xff]
    %v90 = vld [vmem:[#allocation3 + $0x10] sm:$0xff]
    %v91 = vld [vmem:[#allocation3 + $0x18] sm:$0xff]
    %v92 = vld [vmem:[#allocation3 + $0x20] sm:$0xff]
    %v93 = vld [vmem:[#allocation3 + $0x28] sm:$0xff]
    %v94 = vld [vmem:[#allocation3 + $0x30] sm:$0xff]
    %v95 = vld [vmem:[#allocation3 + $0x38] sm:$0xff]
    %v96 = vld [vmem:[#allocation3 + $0x40] sm:$0xff]
    %v97 = vld [vmem:[#allocation3 + $0x48] sm:$0xff]
    %v98 = vld [vmem:[#allocation3 + $0x50] sm:$0xff]
    %v99 = vld [vmem:[#allocation3 + $0x58] sm:$0xff]
    %v100 = vld [vmem:[#allocation3 + $0x60] sm:$0xff]
    %v101 = vld [vmem:[#allocation3 + $0x68] sm:$0xff]
    %v102 = vld [vmem:[#allocation3 + $0x70] sm:$0xff]
    %v103 = vld [vmem:[#allocation3 + $0x78] sm:$0xff]
    %v104 = vld [vmem:[#allocation3 + $0x80] sm:$0xff]
    %v105 = vld [vmem:[#allocation3 + $0x88] sm:$0xff]
    %v106 = vld [vmem:[#allocation3 + $0x90] sm:$0xff]
    %v107 = vld [vmem:[#allocation3 + $0x98] sm:$0xff]
    %v108 = vld [vmem:[#allocation3 + $0xa0] sm:$0xff]
    %v109 = vld [vmem:[#allocation3 + $0xa8] sm:$0xff]
    %v110 = vld [vmem:[#allocation3 + $0xb0] sm:$0xff]
    %v111 = vld [vmem:[#allocation3 + $0xb8] sm:$0xff]
    %v112 = vld [vmem:[#allocation3 + $0xc0] sm:$0xff]
    %v113 = vld [vmem:[#allocation3 + $0xc8] sm:$0xff]
    %v114 = vld [vmem:[#allocation3 + $0xd0] sm:$0xff]
    %v115 = vld [vmem:[#allocation3 + $0xd8] sm:$0xff]
    %v116 = vld [vmem:[#allocation3 + $0xe0] sm:$0xff]
    %v117 = vld [vmem:[#allocation3 + $0xe8] sm:$0xff]
    %v118 = vld [vmem:[#allocation3 + $0xf0] sm:$0xff]
    %v119 = vld [vmem:[#allocation3 + $0xf8] sm:$0xff]
    %v120 = vunpack.c.l.bf16 %v88
    %v121 = vunpack.c.h.bf16 %v88
    %v122 = vunpack.c.l.bf16 %v89
    %v123 = vunpack.c.h.bf16 %v89
    %v124 = vunpack.c.l.bf16 %v90
    %v125 = vunpack.c.h.bf16 %v90
    %v126 = vunpack.c.l.bf16 %v91
    %v127 = vunpack.c.h.bf16 %v91
    %v128 = vunpack.c.l.bf16 %v92
    %v129 = vunpack.c.h.bf16 %v92
    %v130 = vunpack.c.l.bf16 %v93
    %v131 = vunpack.c.h.bf16 %v93
    %v132 = vunpack.c.l.bf16 %v94
    %v133 = vunpack.c.h.bf16 %v94
    %v134 = vunpack.c.l.bf16 %v95
    %v135 = vunpack.c.h.bf16 %v95
    %v136 = vunpack.c.l.bf16 %v96
    %v137 = vunpack.c.h.bf16 %v96
    %v138 = vunpack.c.l.bf16 %v97
    %v139 = vunpack.c.h.bf16 %v97
    %v140 = vunpack.c.l.bf16 %v98
    %v141 = vunpack.c.h.bf16 %v98
    %v142 = vunpack.c.l.bf16 %v99
    %v143 = vunpack.c.h.bf16 %v99
    %v144 = vunpack.c.l.bf16 %v100
    %v145 = vunpack.c.h.bf16 %v100
    %v146 = vunpack.c.l.bf16 %v101
    %v147 = vunpack.c.h.bf16 %v101
    %v148 = vunpack.c.l.bf16 %v102
    %v149 = vunpack.c.h.bf16 %v102
    %v150 = vunpack.c.l.bf16 %v103
    %v151 = vunpack.c.h.bf16 %v103
    %v152 = vunpack.c.l.bf16 %v104
    %v153 = vunpack.c.h.bf16 %v104
    %v154 = vunpack.c.l.bf16 %v105
    %v155 = vunpack.c.h.bf16 %v105
    %v156 = vunpack.c.l.bf16 %v106
    %v157 = vunpack.c.h.bf16 %v106
    %v158 = vunpack.c.l.bf16 %v107
    %v159 = vunpack.c.h.bf16 %v107
    %v160 = vunpack.c.l.bf16 %v108
    %v161 = vunpack.c.h.bf16 %v108
    %v162 = vunpack.c.l.bf16 %v109
    %v163 = vunpack.c.h.bf16 %v109
    %v164 = vunpack.c.l.bf16 %v110
    %v165 = vunpack.c.h.bf16 %v110
    %v166 = vunpack.c.l.bf16 %v111
    %v167 = vunpack.c.h.bf16 %v111
    %v168 = vunpack.c.l.bf16 %v112
    %v169 = vunpack.c.h.bf16 %v112
    %v170 = vunpack.c.l.bf16 %v113
    %v171 = vunpack.c.h.bf16 %v113
    %v172 = vunpack.c.l.bf16 %v114
    %v173 = vunpack.c.h.bf16 %v114
    %v174 = vunpack.c.l.bf16 %v115
    %v175 = vunpack.c.h.bf16 %v115
    %v176 = vunpack.c.l.bf16 %v116
    %v177 = vunpack.c.h.bf16 %v116
    %v178 = vunpack.c.l.bf16 %v117
    %v179 = vunpack.c.h.bf16 %v117
    %v180 = vunpack.c.l.bf16 %v118
    %v181 = vunpack.c.h.bf16 %v118
    %v182 = vunpack.c.l.bf16 %v119
    %v183 = vunpack.c.h.bf16 %v119
    %v184 = vadd.f32 %v120, %v124
    %v185 = vadd.f32 %v184, %v128
    %v186 = vadd.f32 %v185, %v132
    %v187 = vadd.f32 %v186, %v136
    %v188 = vadd.f32 %v187, %v140
    %v189 = vadd.f32 %v188, %v144
    %v190 = vadd.f32 %v189, %v148
    %v191 = vrot.slane %v190, 4
    %v192 = vadd.f32 %v190, %v191
    %v193 = vrot.slane %v192, 2
    %v194 = vadd.f32 %v192, %v193
    %v195 = vrot.slane %v194, 1
    %v196 = vadd.f32 %v194, %v195
    %v197 = vadd.f32 %v121, %v125
    %v198 = vadd.f32 %v197, %v129
    %v199 = vadd.f32 %v198, %v133
    %v200 = vadd.f32 %v199, %v137
    %v201 = vadd.f32 %v200, %v141
    %v202 = vadd.f32 %v201, %v145
    %v203 = vadd.f32 %v202, %v149
    %v204 = vrot.slane %v203, 4
    %v205 = vadd.f32 %v203, %v204
    %v206 = vrot.slane %v205, 2
    %v207 = vadd.f32 %v205, %v206
    %v208 = vrot.slane %v207, 1
    %v209 = vadd.f32 %v207, %v208
    %v210 = vadd.f32 %v122, %v126
    %v211 = vadd.f32 %v210, %v130
    %v212 = vadd.f32 %v211, %v134
    %v213 = vadd.f32 %v212, %v138
    %v214 = vadd.f32 %v213, %v142
    %v215 = vadd.f32 %v214, %v146
    %v216 = vadd.f32 %v215, %v150
    %v217 = vrot.slane %v216, 4
    %v218 = vadd.f32 %v216, %v217
    %v219 = vrot.slane %v218, 2
    %v220 = vadd.f32 %v218, %v219
    %v221 = vrot.slane %v220, 1
    %v222 = vadd.f32 %v220, %v221
    %v223 = vadd.f32 %v123, %v127
    %v224 = vadd.f32 %v223, %v131
    %v225 = vadd.f32 %v224, %v135
    %v226 = vadd.f32 %v225, %v139
    %v227 = vadd.f32 %v226, %v143
    %v228 = vadd.f32 %v227, %v147
    %v229 = vadd.f32 %v228, %v151
    %v230 = vrot.slane %v229, 4
    %v231 = vadd.f32 %v229, %v230
    %v232 = vrot.slane %v231, 2
    %v233 = vadd.f32 %v231, %v232
    %v234 = vrot.slane %v233, 1
    %v235 = vadd.f32 %v233, %v234
    %v236 = vadd.f32 %v152, %v156
    %v237 = vadd.f32 %v236, %v160
    %v238 = vadd.f32 %v237, %v164
    %v239 = vadd.f32 %v238, %v168
    %v240 = vadd.f32 %v239, %v172
    %v241 = vadd.f32 %v240, %v176
    %v242 = vadd.f32 %v241, %v180
    %v243 = vrot.slane %v242, 4
    %v244 = vadd.f32 %v242, %v243
    %v245 = vrot.slane %v244, 2
    %v246 = vadd.f32 %v244, %v245
    %v247 = vrot.slane %v246, 1
    %v248 = vadd.f32 %v246, %v247
    %v249 = vadd.f32 %v153, %v157
    %v250 = vadd.f32 %v249, %v161
    %v251 = vadd.f32 %v250, %v165
    %v252 = vadd.f32 %v251, %v169
    %v253 = vadd.f32 %v252, %v173
    %v254 = vadd.f32 %v253, %v177
    %v255 = vadd.f32 %v254, %v181
    %v256 = vrot.slane %v255, 4
    %v257 = vadd.f32 %v255, %v256
    %v258 = vrot.slane %v257, 2
    %v259 = vadd.f32 %v257, %v258
    %v260 = vrot.slane %v259, 1
    %v261 = vadd.f32 %v259, %v260
    %v262 = vadd.f32 %v154, %v158
    %v263 = vadd.f32 %v262, %v162
    %v264 = vadd.f32 %v263, %v166
    %v265 = vadd.f32 %v264, %v170
    %v266 = vadd.f32 %v265, %v174
    %v267 = vadd.f32 %v266, %v178
    %v268 = vadd.f32 %v267, %v182
    %v269 = vrot.slane %v268, 4
    %v270 = vadd.f32 %v268, %v269
    %v271 = vrot.slane %v270, 2
    %v272 = vadd.f32 %v270, %v271
    %v273 = vrot.slane %v272, 1
    %v274 = vadd.f32 %v272, %v273
    %v275 = vadd.f32 %v155, %v159
    %v276 = vadd.f32 %v275, %v163
    %v277 = vadd.f32 %v276, %v167
    %v278 = vadd.f32 %v277, %v171
    %v279 = vadd.f32 %v278, %v175
    %v280 = vadd.f32 %v279, %v179
    %v281 = vadd.f32 %v280, %v183
    %v282 = vrot.slane %v281, 4
    %v283 = vadd.f32 %v281, %v282
    %v284 = vrot.slane %v283, 2
    %v285 = vadd.f32 %v283, %v284
    %v286 = vrot.slane %v285, 1
    %v287 = vadd.f32 %v285, %v286
    %v296 = vrot.slane %v209, 6
    %v297 = vrot.slane %v222, 4
    %v298 = vrot.slane %v235, 2
    %v299 = vrot.slane %v261, 6
    %v300 = vrot.slane %v274, 4
    %v301 = vrot.slane %v287, 2
    %vm302 = vcmask 1041408
    %v303 = vsel %vm302, %v196, %v296
    %vm304 = vcmask 1045508
    %v305 = vsel %vm304, %v297, %v298
    %vm306 = vcmask 1043456
    %v307 = vsel %vm306, %v303, %v305
    %v308 = vsel %vm302, %v248, %v299
    %v309 = vsel %vm304, %v300, %v301
    %v310 = vsel %vm306, %v308, %v309
    %vm311 = vcmask 1044484
    %v312 = vsel %vm311, %v307, %v307
    %vm313 = vcmask 1046534
    %v314 = vsel %vm313, %v307, %v312
    %v315 = vrot.slane %v310, 7
    %vm316 = vcmask 1041409
    %v317 = vsel %vm316, %v315, %v314
    %vm318 = vcmask 1043459
    %v319 = vsel %vm318, %v315, %v317
    %vm320 = vcmask 1045509
    %v321 = vsel %vm320, %v315, %v319
    %vm322 = vcmask 1047559
    %v323 = vsel %vm322, %v315, %v321
    %v325 = vadd.f32 %v87, %v323
    %326 = vst [vmem:[#allocation2] sm:$0xff] %v325
    // Predicated region
    $region42: #{tpu_custom_call.1} parent=1 // pred_check
      %p327 = pneg %p82
    $region43: #{tpu_custom_call.1} parent=1 // pred_check_branch
      %329 = sbr.rel (%p327) target = $region45
    $region44: #{tpu_custom_call.1} parent=1 // pred_region
      %v330 = vld [vmem:[#allocation2] sm:$0xff]
      %v331 = vmul.f32 %v330, 0.015625
      %v332 = vld [vmem:[#allocation6] sm:$0xff]
      %v333 = vld [vmem:[#allocation6 + $0x8] sm:$0xff]
      %v334 = vld [vmem:[#allocation6 + $0x10] sm:$0xff]
      %v335 = vld [vmem:[#allocation6 + $0x18] sm:$0xff]
      %v336 = vld [vmem:[#allocation6 + $0x20] sm:$0xff]
      %v337 = vld [vmem:[#allocation6 + $0x28] sm:$0xff]
      %v338 = vld [vmem:[#allocation6 + $0x30] sm:$0xff]
      %v339 = vld [vmem:[#allocation6 + $0x38] sm:$0xff]
      %v340 = vld [vmem:[#allocation6 + $0x40] sm:$0xff]
      %v341 = vld [vmem:[#allocation6 + $0x48] sm:$0xff]
      %v342 = vld [vmem:[#allocation6 + $0x50] sm:$0xff]
      %v343 = vld [vmem:[#allocation6 + $0x58] sm:$0xff]
      %v344 = vld [vmem:[#allocation6 + $0x60] sm:$0xff]
      %v345 = vld [vmem:[#allocation6 + $0x68] sm:$0xff]
      %v346 = vld [vmem:[#allocation6 + $0x70] sm:$0xff]
      %v347 = vld [vmem:[#allocation6 + $0x78] sm:$0xff]
      %v348 = vld [vmem:[#allocation6 + $0x80] sm:$0xff]
      %v349 = vld [vmem:[#allocation6 + $0x88] sm:$0xff]
      %v350 = vld [vmem:[#allocation6 + $0x90] sm:$0xff]
      %v351 = vld [vmem:[#allocation6 + $0x98] sm:$0xff]
      %v352 = vld [vmem:[#allocation6 + $0xa0] sm:$0xff]
      %v353 = vld [vmem:[#allocation6 + $0xa8] sm:$0xff]
      %v354 = vld [vmem:[#allocation6 + $0xb0] sm:$0xff]
      %v355 = vld [vmem:[#allocation6 + $0xb8] sm:$0xff]
      %v356 = vld [vmem:[#allocation6 + $0xc0] sm:$0xff]
      %v357 = vld [vmem:[#allocation6 + $0xc8] sm:$0xff]
      %v358 = vld [vmem:[#allocation6 + $0xd0] sm:$0xff]
      %v359 = vld [vmem:[#allocation6 + $0xd8] sm:$0xff]
      %v360 = vld [vmem:[#allocation6 + $0xe0] sm:$0xff]
      %v361 = vld [vmem:[#allocation6 + $0xe8] sm:$0xff]
      %v362 = vld [vmem:[#allocation6 + $0xf0] sm:$0xff]
      %v363 = vld [vmem:[#allocation6 + $0xf8] sm:$0xff]
      %v364 = vld [vmem:[#allocation6 + $0x100] sm:$0xff]
      %v365 = vld [vmem:[#allocation6 + $0x108] sm:$0xff]
      %v366 = vld [vmem:[#allocation6 + $0x110] sm:$0xff]
      %v367 = vld [vmem:[#allocation6 + $0x118] sm:$0xff]
      %v368 = vld [vmem:[#allocation6 + $0x120] sm:$0xff]
      %v369 = vld [vmem:[#allocation6 + $0x128] sm:$0xff]
      %v370 = vld [vmem:[#allocation6 + $0x130] sm:$0xff]
      %v371 = vld [vmem:[#allocation6 + $0x138] sm:$0xff]
      %v372 = vld [vmem:[#allocation6 + $0x140] sm:$0xff]
      %v373 = vld [vmem:[#allocation6 + $0x148] sm:$0xff]
      %v374 = vld [vmem:[#allocation6 + $0x150] sm:$0xff]
      %v375 = vld [vmem:[#allocation6 + $0x158] sm:$0xff]
      %v376 = vld [vmem:[#allocation6 + $0x160] sm:$0xff]
      %v377 = vld [vmem:[#allocation6 + $0x168] sm:$0xff]
      %v378 = vld [vmem:[#allocation6 + $0x170] sm:$0xff]
      %v379 = vld [vmem:[#allocation6 + $0x178] sm:$0xff]
      %v380 = vld [vmem:[#allocation6 + $0x180] sm:$0xff]
      %v381 = vld [vmem:[#allocation6 + $0x188] sm:$0xff]
      %v382 = vld [vmem:[#allocation6 + $0x190] sm:$0xff]
      %v383 = vld [vmem:[#allocation6 + $0x198] sm:$0xff]
      %v384 = vld [vmem:[#allocation6 + $0x1a0] sm:$0xff]
      %v385 = vld [vmem:[#allocation6 + $0x1a8] sm:$0xff]
      %v386 = vld [vmem:[#allocation6 + $0x1b0] sm:$0xff]
      %v387 = vld [vmem:[#allocation6 + $0x1b8] sm:$0xff]
      %v388 = vld [vmem:[#allocation6 + $0x1c0] sm:$0xff]
      %v389 = vld [vmem:[#allocation6 + $0x1c8] sm:$0xff]
      %v390 = vld [vmem:[#allocation6 + $0x1d0] sm:$0xff]
      %v391 = vld [vmem:[#allocation6 + $0x1d8] sm:$0xff]
      %v392 = vld [vmem:[#allocation6 + $0x1e0] sm:$0xff]
      %v393 = vld [vmem:[#allocation6 + $0x1e8] sm:$0xff]
      %v394 = vld [vmem:[#allocation6 + $0x1f0] sm:$0xff]
      %v395 = vld [vmem:[#allocation6 + $0x1f8] sm:$0xff]
      %v396 = vld [vmem:[#allocation6 + $0x200] sm:$0xff]
      %v397 = vld [vmem:[#allocation6 + $0x208] sm:$0xff]
      %v398 = vld [vmem:[#allocation6 + $0x210] sm:$0xff]
      %v399 = vld [vmem:[#allocation6 + $0x218] sm:$0xff]
      %v400 = vld [vmem:[#allocation6 + $0x220] sm:$0xff]
      %v401 = vld [vmem:[#allocation6 + $0x228] sm:$0xff]
      %v402 = vld [vmem:[#allocation6 + $0x230] sm:$0xff]
      %v403 = vld [vmem:[#allocation6 + $0x238] sm:$0xff]
      %v404 = vld [vmem:[#allocation6 + $0x240] sm:$0xff]
      %v405 = vld [vmem:[#allocation6 + $0x248] sm:$0xff]
      %v406 = vld [vmem:[#allocation6 + $0x250] sm:$0xff]
      %v407 = vld [vmem:[#allocation6 + $0x258] sm:$0xff]
      %v408 = vld [vmem:[#allocation6 + $0x260] sm:$0xff]
      %v409 = vld [vmem:[#allocation6 + $0x268] sm:$0xff]
      %v410 = vld [vmem:[#allocation6 + $0x270] sm:$0xff]
      %v411 = vld [vmem:[#allocation6 + $0x278] sm:$0xff]
      %v412 = vld [vmem:[#allocation6 + $0x280] sm:$0xff]
      %v413 = vld [vmem:[#allocation6 + $0x288] sm:$0xff]
      %v414 = vld [vmem:[#allocation6 + $0x290] sm:$0xff]
      %v415 = vld [vmem:[#allocation6 + $0x298] sm:$0xff]
      %v416 = vld [vmem:[#allocation6 + $0x2a0] sm:$0xff]
      %v417 = vld [vmem:[#allocation6 + $0x2a8] sm:$0xff]
      %v418 = vld [vmem:[#allocation6 + $0x2b0] sm:$0xff]
      %v419 = vld [vmem:[#allocation6 + $0x2b8] sm:$0xff]
      %v420 = vld [vmem:[#allocation6 + $0x2c0] sm:$0xff]
      %v421 = vld [vmem:[#allocation6 + $0x2c8] sm:$0xff]
      %v422 = vld [vmem:[#allocation6 + $0x2d0] sm:$0xff]
      %v423 = vld [vmem:[#allocation6 + $0x2d8] sm:$0xff]
      %v424 = vld [vmem:[#allocation6 + $0x2e0] sm:$0xff]
      %v425 = vld [vmem:[#allocation6 + $0x2e8] sm:$0xff]
      %v426 = vld [vmem:[#allocation6 + $0x2f0] sm:$0xff]
      %v427 = vld [vmem:[#allocation6 + $0x2f8] sm:$0xff]
      %v428 = vld [vmem:[#allocation6 + $0x300] sm:$0xff]
      %v429 = vld [vmem:[#allocation6 + $0x308] sm:$0xff]
      %v430 = vld [vmem:[#allocation6 + $0x310] sm:$0xff]
      %v431 = vld [vmem:[#allocation6 + $0x318] sm:$0xff]
      %v432 = vld [vmem:[#allocation6 + $0x320] sm:$0xff]
      %v433 = vld [vmem:[#allocation6 + $0x328] sm:$0xff]
      %v434 = vld [vmem:[#allocation6 + $0x330] sm:$0xff]
      %v435 = vld [vmem:[#allocation6 + $0x338] sm:$0xff]
      %v436 = vld [vmem:[#allocation6 + $0x340] sm:$0xff]
      %v437 = vld [vmem:[#allocation6 + $0x348] sm:$0xff]
      %v438 = vld [vmem:[#allocation6 + $0x350] sm:$0xff]
      %v439 = vld [vmem:[#allocation6 + $0x358] sm:$0xff]
      %v440 = vld [vmem:[#allocation6 + $0x360] sm:$0xff]
      %v441 = vld [vmem:[#allocation6 + $0x368] sm:$0xff]
      %v442 = vld [vmem:[#allocation6 + $0x370] sm:$0xff]
      %v443 = vld [vmem:[#allocation6 + $0x378] sm:$0xff]
      %v444 = vld [vmem:[#allocation6 + $0x380] sm:$0xff]
      %v445 = vld [vmem:[#allocation6 + $0x388] sm:$0xff]
      %v446 = vld [vmem:[#allocation6 + $0x390] sm:$0xff]
      %v447 = vld [vmem:[#allocation6 + $0x398] sm:$0xff]
      %v448 = vld [vmem:[#allocation6 + $0x3a0] sm:$0xff]
      %v449 = vld [vmem:[#allocation6 + $0x3a8] sm:$0xff]
      %v450 = vld [vmem:[#allocation6 + $0x3b0] sm:$0xff]
      %v451 = vld [vmem:[#allocation6 + $0x3b8] sm:$0xff]
      %v452 = vld [vmem:[#allocation6 + $0x3c0] sm:$0xff]
      %v453 = vld [vmem:[#allocation6 + $0x3c8] sm:$0xff]
      %v454 = vld [vmem:[#allocation6 + $0x3d0] sm:$0xff]
      %v455 = vld [vmem:[#allocation6 + $0x3d8] sm:$0xff]
      %v456 = vld [vmem:[#allocation6 + $0x3e0] sm:$0xff]
      %v457 = vld [vmem:[#allocation6 + $0x3e8] sm:$0xff]
      %v458 = vld [vmem:[#allocation6 + $0x3f0] sm:$0xff]
      %v459 = vld [vmem:[#allocation6 + $0x3f8] sm:$0xff]
      %v460 = vld [vmem:[#allocation8] sm:$0x3]
      %v462 = vperm.slane %v460, 0
      %v463 = vperm.slane %v460, 1
      %467 = vst [vmem:[#allocation1] ss:$4 sm:$0xff] %v331
      %v468 = vld.sshfl [vmem:[#allocation1] sm:$0xff pattern:$0x73625140]
      %v469 = vld.sshfl [vmem:[#allocation1 + $0x8] sm:$0xff pattern:$0x73625140]
      %v470 = vld.sshfl [vmem:[#allocation1 + $0x10] sm:$0xff pattern:$0x73625140]
      %v471 = vld.sshfl [vmem:[#allocation1 + $0x18] sm:$0xff pattern:$0x73625140]
      %476 = vmatpush.msra.mxu0 %v362
      %477 = vmatpush.msra.mxu0 %v360
      %478 = vmatpush.msra.mxu0 %v358
      %479 = vmatpush.msra.mxu0 %v356
      %480 = vmatpush.msra.mxu0 %v354
      %481 = vmatpush.msra.mxu0 %v352
      %482 = vmatpush.msra.mxu0 %v350
      %483 = vmatpush.msra.mxu0 %v348
      %484 = vmatpush.msra.mxu0 %v346
      %485 = vmatpush.msra.mxu0 %v344
      %486 = vmatpush.msra.mxu0 %v342
      %487 = vmatpush.msra.mxu0 %v340
      %488 = vmatpush.msra.mxu0 %v338
      %489 = vmatpush.msra.mxu0 %v336
      %490 = vmatpush.msra.mxu0 %v334
      %491 = vmatpush.msra.mxu0 %v332
      %492 = vmatmul.f32.gmra.mxu0 %v468
      %v493 = vpop.f32.mrf.mxu0
      %v494 = vadd.f32 %v462, %v493
      %495 = vdwg.mxu0
      %496 = vmatpush.msra.mxu0 %v394
      %497 = vmatpush.msra.mxu0 %v392
      %498 = vmatpush.msra.mxu0 %v390
      %499 = vmatpush.msra.mxu0 %v388
      %500 = vmatpush.msra.mxu0 %v386
      %501 = vmatpush.msra.mxu0 %v384
      %502 = vmatpush.msra.mxu0 %v382
      %503 = vmatpush.msra.mxu0 %v380
      %504 = vmatpush.msra.mxu0 %v378
      %505 = vmatpush.msra.mxu0 %v376
      %506 = vmatpush.msra.mxu0 %v374
      %507 = vmatpush.msra.mxu0 %v372
      %508 = vmatpush.msra.mxu0 %v370
      %509 = vmatpush.msra.mxu0 %v368
      %510 = vmatpush.msra.mxu0 %v366
      %511 = vmatpush.msra.mxu0 %v364
      %512 = vmatmul.f32.gmra.mxu0 %v469
      %v513 = vpop.f32.mrf.mxu0
      %v514 = vadd.f32 %v494, %v513
      %515 = vdwg.mxu0
      %516 = vmatpush.msra.mxu0 %v426
      %517 = vmatpush.msra.mxu0 %v424
      %518 = vmatpush.msra.mxu0 %v422
      %519 = vmatpush.msra.mxu0 %v420
      %520 = vmatpush.msra.mxu0 %v418
      %521 = vmatpush.msra.mxu0 %v416
      %522 = vmatpush.msra.mxu0 %v414
      %523 = vmatpush.msra.mxu0 %v412
      %524 = vmatpush.msra.mxu0 %v410
      %525 = vmatpush.msra.mxu0 %v408
      %526 = vmatpush.msra.mxu0 %v406
      %527 = vmatpush.msra.mxu0 %v404
      %528 = vmatpush.msra.mxu0 %v402
      %529 = vmatpush.msra.mxu0 %v400
      %530 = vmatpush.msra.mxu0 %v398
      %531 = vmatpush.msra.mxu0 %v396
      %532 = vmatmul.f32.gmra.mxu0 %v470
      %v533 = vpop.f32.mrf.mxu0
      %v534 = vadd.f32 %v514, %v533
      %535 = vdwg.mxu0
      %536 = vmatpush.msra.mxu0 %v458
      %537 = vmatpush.msra.mxu0 %v456
      %538 = vmatpush.msra.mxu0 %v454
      %539 = vmatpush.msra.mxu0 %v452
      %540 = vmatpush.msra.mxu0 %v450
      %541 = vmatpush.msra.mxu0 %v448
      %542 = vmatpush.msra.mxu0 %v446
      %543 = vmatpush.msra.mxu0 %v444
      %544 = vmatpush.msra.mxu0 %v442
      %545 = vmatpush.msra.mxu0 %v440
      %546 = vmatpush.msra.mxu0 %v438
      %547 = vmatpush.msra.mxu0 %v436
      %548 = vmatpush.msra.mxu0 %v434
      %549 = vmatpush.msra.mxu0 %v432
      %550 = vmatpush.msra.mxu0 %v430
      %551 = vmatpush.msra.mxu0 %v428
      %552 = vmatmul.f32.gmra.mxu0 %v471
      %v553 = vpop.f32.mrf.mxu0
      %v554 = vadd.f32 %v534, %v553
      %555 = vdwg.mxu0
      %556 = vmatpush.msra.mxu0 %v363
      %557 = vmatpush.msra.mxu0 %v361
      %558 = vmatpush.msra.mxu0 %v359
      %559 = vmatpush.msra.mxu0 %v357
      %560 = vmatpush.msra.mxu0 %v355
      %561 = vmatpush.msra.mxu0 %v353
      %562 = vmatpush.msra.mxu0 %v351
      %563 = vmatpush.msra.mxu0 %v349
      %564 = vmatpush.msra.mxu0 %v347
      %565 = vmatpush.msra.mxu0 %v345
      %566 = vmatpush.msra.mxu0 %v343
      %567 = vmatpush.msra.mxu0 %v341
      %568 = vmatpush.msra.mxu0 %v339
      %569 = vmatpush.msra.mxu0 %v337
      %570 = vmatpush.msra.mxu0 %v335
      %571 = vmatpush.msra.mxu0 %v333
      %572 = vmatmul.f32.gmra.mxu0 %v468
      %v573 = vpop.f32.mrf.mxu0
      %v574 = vadd.f32 %v463, %v573
      %575 = vdwg.mxu0
      %576 = vmatpush.msra.mxu0 %v395
      %577 = vmatpush.msra.mxu0 %v393
      %578 = vmatpush.msra.mxu0 %v391
      %579 = vmatpush.msra.mxu0 %v389
      %580 = vmatpush.msra.mxu0 %v387
      %581 = vmatpush.msra.mxu0 %v385
      %582 = vmatpush.msra.mxu0 %v383
      %583 = vmatpush.msra.mxu0 %v381
      %584 = vmatpush.msra.mxu0 %v379
      %585 = vmatpush.msra.mxu0 %v377
      %586 = vmatpush.msra.mxu0 %v375
      %587 = vmatpush.msra.mxu0 %v373
      %588 = vmatpush.msra.mxu0 %v371
      %589 = vmatpush.msra.mxu0 %v369
      %590 = vmatpush.msra.mxu0 %v367
      %591 = vmatpush.msra.mxu0 %v365
      %592 = vmatmul.f32.gmra.mxu0 %v469
      %v593 = vpop.f32.mrf.mxu0
      %v594 = vadd.f32 %v574, %v593
      %595 = vdwg.mxu0
      %596 = vmatpush.msra.mxu0 %v427
      %597 = vmatpush.msra.mxu0 %v425
      %598 = vmatpush.msra.mxu0 %v423
      %599 = vmatpush.msra.mxu0 %v421
      %600 = vmatpush.msra.mxu0 %v419
      %601 = vmatpush.msra.mxu0 %v417
      %602 = vmatpush.msra.mxu0 %v415
      %603 = vmatpush.msra.mxu0 %v413
      %604 = vmatpush.msra.mxu0 %v411
      %605 = vmatpush.msra.mxu0 %v409
      %606 = vmatpush.msra.mxu0 %v407
      %607 = vmatpush.msra.mxu0 %v405
      %608 = vmatpush.msra.mxu0 %v403
      %609 = vmatpush.msra.mxu0 %v401
      %610 = vmatpush.msra.mxu0 %v399
      %611 = vmatpush.msra.mxu0 %v397
      %612 = vmatmul.f32.gmra.mxu0 %v470
      %v613 = vpop.f32.mrf.mxu0
      %v614 = vadd.f32 %v594, %v613
      %615 = vdwg.mxu0
      %616 = vmatpush.msra.mxu0 %v459
      %617 = vmatpush.msra.mxu0 %v457
      %618 = vmatpush.msra.mxu0 %v455
      %619 = vmatpush.msra.mxu0 %v453
      %620 = vmatpush.msra.mxu0 %v451
      %621 = vmatpush.msra.mxu0 %v449
      %622 = vmatpush.msra.mxu0 %v447
      %623 = vmatpush.msra.mxu0 %v445
      %624 = vmatpush.msra.mxu0 %v443
      %625 = vmatpush.msra.mxu0 %v441
      %626 = vmatpush.msra.mxu0 %v439
      %627 = vmatpush.msra.mxu0 %v437
      %628 = vmatpush.msra.mxu0 %v435
      %629 = vmatpush.msra.mxu0 %v433
      %630 = vmatpush.msra.mxu0 %v431
      %631 = vmatpush.msra.mxu0 %v429
      %632 = vmatmul.f32.gmra.mxu0 %v471
      %v633 = vpop.f32.mrf.mxu0
      %v634 = vadd.f32 %v614, %v633
      %635 = vdwg.mxu0
      %v636 = vmax.f32 %v554, 0.0
      %v637 = vmax.f32 %v634, 0.0
      %v638 = vld [vmem:[#allocation9] sm:$0xff]
      %v639 = vld [vmem:[#allocation9 + $0x8] sm:$0xff]
      %v640 = vld [vmem:[#allocation9 + $0x10] sm:$0xff]
      %v641 = vld [vmem:[#allocation9 + $0x18] sm:$0xff]
      %v642 = vld [vmem:[#allocation9 + $0x20] sm:$0xff]
      %v643 = vld [vmem:[#allocation9 + $0x28] sm:$0xff]
      %v644 = vld [vmem:[#allocation9 + $0x30] sm:$0xff]
      %v645 = vld [vmem:[#allocation9 + $0x38] sm:$0xff]
      %v646 = vld [vmem:[#allocation9 + $0x40] sm:$0xff]
      %v647 = vld [vmem:[#allocation9 + $0x48] sm:$0xff]
      %v648 = vld [vmem:[#allocation9 + $0x50] sm:$0xff]
      %v649 = vld [vmem:[#allocation9 + $0x58] sm:$0xff]
      %v650 = vld [vmem:[#allocation9 + $0x60] sm:$0xff]
      %v651 = vld [vmem:[#allocation9 + $0x68] sm:$0xff]
      %v652 = vld [vmem:[#allocation9 + $0x70] sm:$0xff]
      %v653 = vld [vmem:[#allocation9 + $0x78] sm:$0xff]
      %v654 = vld [vmem:[#allocation9 + $0x80] sm:$0xff]
      %v655 = vld [vmem:[#allocation9 + $0x88] sm:$0xff]
      %v656 = vld [vmem:[#allocation9 + $0x90] sm:$0xff]
      %v657 = vld [vmem:[#allocation9 + $0x98] sm:$0xff]
      %v658 = vld [vmem:[#allocation9 + $0xa0] sm:$0xff]
      %v659 = vld [vmem:[#allocation9 + $0xa8] sm:$0xff]
      %v660 = vld [vmem:[#allocation9 + $0xb0] sm:$0xff]
      %v661 = vld [vmem:[#allocation9 + $0xb8] sm:$0xff]
      %v662 = vld [vmem:[#allocation9 + $0xc0] sm:$0xff]
      %v663 = vld [vmem:[#allocation9 + $0xc8] sm:$0xff]
      %v664 = vld [vmem:[#allocation9 + $0xd0] sm:$0xff]
      %v665 = vld [vmem:[#allocation9 + $0xd8] sm:$0xff]
      %v666 = vld [vmem:[#allocation9 + $0xe0] sm:$0xff]
      %v667 = vld [vmem:[#allocation9 + $0xe8] sm:$0xff]
      %v668 = vld [vmem:[#allocation9 + $0xf0] sm:$0xff]
      %v669 = vld [vmem:[#allocation9 + $0xf8] sm:$0xff]
      %v670 = vld [vmem:[%s4] sm:$0x1]
      %v672 = vperm.slane %v670, 0
      %674 = vmatpush.msra.mxu0 %v653
      %675 = vmatpush.msra.mxu0 %v652
      %676 = vmatpush.msra.mxu0 %v651
      %677 = vmatpush.msra.mxu0 %v650
      %678 = vmatpush.msra.mxu0 %v649
      %679 = vmatpush.msra.mxu0 %v648
      %680 = vmatpush.msra.mxu0 %v647
      %681 = vmatpush.msra.mxu0 %v646
      %682 = vmatpush.msra.mxu0 %v645
      %683 = vmatpush.msra.mxu0 %v644
      %684 = vmatpush.msra.mxu0 %v643
      %685 = vmatpush.msra.mxu0 %v642
      %686 = vmatpush.msra.mxu0 %v641
      %687 = vmatpush.msra.mxu0 %v640
      %688 = vmatpush.msra.mxu0 %v639
      %689 = vmatpush.msra.mxu0 %v638
      %690 = vmatmul.f32.gmra.mxu0 %v636
      %v691 = vpop.f32.mrf.mxu0
      %v692 = vadd.f32 %v672, %v691
      %693 = vdwg.mxu0
      %694 = vmatpush.msra.mxu0 %v669
      %695 = vmatpush.msra.mxu0 %v668
      %696 = vmatpush.msra.mxu0 %v667
      %697 = vmatpush.msra.mxu0 %v666
      %698 = vmatpush.msra.mxu0 %v665
      %699 = vmatpush.msra.mxu0 %v664
      %700 = vmatpush.msra.mxu0 %v663
      %701 = vmatpush.msra.mxu0 %v662
      %702 = vmatpush.msra.mxu0 %v661
      %703 = vmatpush.msra.mxu0 %v660
      %704 = vmatpush.msra.mxu0 %v659
      %705 = vmatpush.msra.mxu0 %v658
      %706 = vmatpush.msra.mxu0 %v657
      %707 = vmatpush.msra.mxu0 %v656
      %708 = vmatpush.msra.mxu0 %v655
      %709 = vmatpush.msra.mxu0 %v654
      %710 = vmatmul.f32.gmra.mxu0 %v637
      %v711 = vpop.f32.mrf.mxu0
      %v712 = vadd.f32 %v692, %v711
      %713 = vdwg.mxu0
      %v714 = vmax.f32 %v712, 0.0
      %v715 = vpack.c.bf16 %v714, %v714
      %716 = vst [vmem:[#allocation11] sm:$0x1] %v715
    $region45: #{tpu_custom_call.1} parent=1 // pred_fallthru
      _
    // Predicated region
    $region46: #{tpu_custom_call.1} parent=1 // pred_check
      _
    $region47: #{tpu_custom_call.1} parent=1 // pred_check_branch
      %718 = sbr.rel (0) target = $region49
    $region48: #{tpu_custom_call.1} parent=1 // pred_region
      %720 = vsyncadd [#allocation5], 0
      %s722 = sshll.u32 [#allocation11], 4
      %s723 = int_to_ptr.vmem [resolvable:$true] %s722
      %s724 = sshll.u32 %s5, 4
      %s725 = int_to_ptr.hbm [resolvable:$true] %s724
      %727 = dma.vmem_to_hbm [thread:$0]  %s723, 16, %s725, [#allocation5]
    $region49: #{tpu_custom_call.1} parent=1 // pred_fallthru
      _
    // Predicated region
    $region50: #{tpu_custom_call.1} parent=1 // pred_check
      _
    $region51: #{tpu_custom_call.1} parent=1 // pred_check_branch
      %729 = sbr.rel (0) target = $region53
    $region52: #{tpu_custom_call.1} parent=1 // pred_region
      %731 = dma.done [#allocation5], 16
    $region53: #{tpu_custom_call.1} parent=1 // pred_fallthru
      _
    %732 = vsyncpa [#allocation4], 1
    %733 = vsyncpa [#allocation7], 1
    %734 = vsyncpa [#allocation10], 1
    %735 = vsyncpa [#allocation5], 1

</llo_original>
